<compile_context>
chip_gen: v7x
topology: tpu7x:2x2x1
jax: 0.10.0
libtpu: 0.0.40
codegen_flags: <defaults>
</compile_context>

<pallas_src>
import functools

import jax
import jax.numpy as jnp
from jax.experimental import pallas as pl
from jax.experimental.pallas import tpu as pltpu

HIDDEN = 32  # hidden channels of the synthetic denoise_fn


def _diffusion_kernel(gam_ref,                                   # SMEM (3B,) scalar-prefetch
                      y0_ref, ycond_ref, mask_ref, noise_ref,    # VMEM (1,C,TS) / (1,Cm,TS)
                      w1c_ref, w1x_ref, b1_ref, wemb_ref,        # resident weights
                      w2_ref, b2_ref,
                      out_ref,                                   # VMEM (1, C, TS)
                      *, use_bf16_act):
    b = pl.program_id(0)
    sqrt_g = gam_ref[3 * b]          # sqrt(sample_gamma)
    sqrt_1mg = gam_ref[3 * b + 1]    # sqrt(1 - sample_gamma)
    g = gam_ref[3 * b + 2]           # sample_gamma (for the embedding)

    y0 = y0_ref[0]                   # (C, TS)
    noise = noise_ref[0]             # (C, TS)
    ycond = ycond_ref[0]             # (C, TS)

    # mask streamed narrow (bf16); clip + cast on the narrow (Cm, TS) tile
    m = jnp.clip(mask_ref[0].astype(jnp.float32), 0.0, 1.0)

    # q_sample + mask blend algebra:
    #   x_img = m*(sqrt(g)*y0 + sqrt(1-g)*noise) + (1-m)*y0
    #         = (sqrt(g)*m + (1-m)) * y0 + (sqrt(1-g)*m) * noise
    coef_y0 = sqrt_g * m + (1.0 - m)      # (Cm, TS)
    coef_nz = sqrt_1mg * m                # (Cm, TS)
    x_img = coef_y0 * y0 + coef_nz * noise  # broadcasts over channels if Cm == 1

    bias = wemb_ref[...] * g + b1_ref[...]  # (H, 1); b1 already folds bemb

    # first 1x1 conv over the concatenated [y_cond | x_img] channels, expressed as
    # two accumulating MXU matmuls (no (2C, TS) concat copy, MXU slot != VALU slot)
    h = jnp.dot(w1c_ref[...], ycond, preferred_element_type=jnp.float32)
    h = h + jnp.dot(w1x_ref[...], x_img, preferred_element_type=jnp.float32)
    h = h + bias

    if use_bf16_act:
        # v6e/v7x: bf16 VPU/EUP halves activation cycles; f32 accumulation on MXU
        hb = h.astype(jnp.bfloat16)
        act = hb * jax.nn.sigmoid(hb)                           # SiLU (bf16)
        noise_hat = jnp.dot(w2_ref[...].astype(jnp.bfloat16), act,
                            preferred_element_type=jnp.float32) + b2_ref[...]
    else:
        act = h * jax.nn.sigmoid(h)                             # SiLU (f32, v5e-safe)
        noise_hat = jnp.dot(w2_ref[...], act,
                            preferred_element_type=jnp.float32) + b2_ref[...]

    out_ref[0] = noise_hat.astype(out_ref.dtype)                # (C, TS)


def make_gammas(num_timesteps, beta_start=1e-4, beta_end=2e-2):
    # set_new_noise_schedule: linear betas -> gammas = cumprod(1 - beta)
    betas = jnp.linspace(beta_start, beta_end, num_timesteps, dtype=jnp.float32)
    return jnp.cumprod(1.0 - betas)


def init_denoise_params(key, c):
    k1, k2, k3 = jax.random.split(key, 3)
    w1c = 0.1 * jax.random.normal(k1, (HIDDEN, c), jnp.float32)   # cond half of 1x1 conv
    w1x = 0.1 * jax.random.normal(k2, (HIDDEN, c), jnp.float32)   # image half of 1x1 conv
    b1 = jnp.zeros((HIDDEN, 1), jnp.float32)
    wemb = 0.1 * jnp.ones((HIDDEN, 1), jnp.float32)
    bemb = jnp.zeros((HIDDEN, 1), jnp.float32)
    b1_fused = b1 + bemb                                          # fold the two biases offline
    w2 = 0.1 * jax.random.normal(k3, (c, HIDDEN), jnp.float32)
    b2 = jnp.zeros((c, 1), jnp.float32)
    return (w1c, w1x, b1_fused, wemb, w2, b2)


def _device_tuning():
    """(use_bf16_act, target_block_bytes, vmem_limit_bytes) per TPU generation."""
    kind = ""
    try:
        kind = jax.devices()[0].device_kind.lower()
    except Exception:
        pass
    is_v6 = "v6" in kind
    is_v7 = "v7" in kind
    use_bf16_act = is_v6 or is_v7        # v5e lacks bf16 VPU/EUP -> keep f32 there
    if is_v6 or ("v5" in kind):
        # 128 MiB physical VMEM: larger tiles, fewer per-grid-step overheads
        return use_bf16_act, 4 << 20, 64 * 1024 * 1024
    # v7x (64 MiB VMEM, 32 MiB scoped default) or unknown device: stay conservative
    return use_bf16_act, 2 << 20, 48 * 1024 * 1024


def _choose_spatial_tile(S, C, B, target_block_bytes, bytes_per_elem=4):
    """Largest lane-aligned TS dividing S with C*TS*bytes <= target; ensures at
    least 2 grid points when possible so both v7x TensorCores get work."""
    max_ts = max(128, (target_block_bytes // (C * bytes_per_elem)) // 128 * 128)
    ts = max(128, (min(S, max_ts) // 128) * 128)
    while ts > 128 and S % ts != 0:
        ts -= 128
    if S % ts != 0:
        ts = 128                     # S is a multiple of 128, so this always divides
    if B * (S // ts) < 2:            # v7x: keep the second 'parallel' axis non-trivial
        cand = ts - 128
        while cand >= 128:
            if S % cand == 0:
                ts = cand
                break
            cand -= 128
    return ts


def diffusion_forward(y_0, y_cond, mask, noise, sample_gammas, params,
                      use_bf16_act=None):
    """Fused Pallas forward. Inputs are NCHW; returns (noise, noise_hat) NCHW."""
    B, C, Hi, Wi = y_0.shape
    Cm = mask.shape[1]
    assert Cm in (1, C), "mask channel count must be 1 or match the image channels"

    auto_bf16, target_block_bytes, vmem_limit = _device_tuning()
    if use_bf16_act is None:
        use_bf16_act = auto_bf16

    # glue: flatten spatial and pad it to a lane-aligned multiple of 128
    S_raw = Hi * Wi
    S = ((S_raw + 127) // 128) * 128
    pad = S - S_raw

    def flat(x):
        xf = x.reshape(B, x.shape[1], S_raw)
        if pad:
            xf = jnp.pad(xf, ((0, 0), (0, 0), (0, pad)))
        return xf

    y0f = flat(y_0)
    ycf = flat(y_cond)
    nzf = flat(noise)
    mkf = flat(mask).astype(jnp.bfloat16)   # binary mask -> exact in bf16, half HBM bytes

    w1c, w1x, b1, wemb, w2, b2 = params

    # per-batch scalars for the kernel, flattened to 1-D (no 2-D SMEM lane padding)
    gam = jnp.stack([jnp.sqrt(sample_gammas),
                     jnp.sqrt(1.0 - sample_gammas),
                     sample_gammas], axis=-1).reshape(-1).astype(jnp.float32)  # (3B,)

    TS = _choose_spatial_tile(S, C, B, target_block_bytes)

    img_spec = pl.BlockSpec((1, C, TS), lambda b, s, g: (b, 0, s))
    msk_spec = pl.BlockSpec((1, Cm, TS), lambda b, s, g: (b, 0, s))

    def full_spec(arr):
        return pl.BlockSpec(arr.shape, lambda b, s, g, _n=arr.ndim: (0,) * _n)

    grid_spec = pltpu.PrefetchScalarGridSpec(
        num_scalar_prefetch=1,
        grid=(B, S // TS),
        in_specs=[img_spec, img_spec, msk_spec, img_spec,
                  full_spec(w1c), full_spec(w1x), full_spec(b1),
                  full_spec(wemb), full_spec(w2), full_spec(b2)],
        out_specs=pl.BlockSpec((1, C, TS), lambda b, s, g: (b, 0, s)),
    )

    kernel = functools.partial(_diffusion_kernel, use_bf16_act=use_bf16_act)

    noise_hat = pl.pallas_call(
        kernel,
        out_shape=jax.ShapeDtypeStruct((B, C, S), jnp.float32),
        grid_spec=grid_spec,
        compiler_params=pltpu.CompilerParams(
            dimension_semantics=("parallel", "parallel"),
            vmem_limit_bytes=vmem_limit),
    )(gam, y0f, ycf, mkf, nzf, w1c, w1x, b1, wemb, w2, b2)

    noise_hat = noise_hat[:, :, :S_raw].reshape(B, C, Hi, Wi)
    return noise, noise_hat


def _reference_forward(y_0, y_cond, mask, noise, sample_gammas, params,
                       use_bf16_act=False):
    """Pure-JAX reference of the fused kernel (for correctness checking)."""
    B, C, Hi, Wi = y_0.shape
    S = Hi * Wi
    w1c, w1x, b1, wemb, w2, b2 = params
    g4 = sample_gammas.reshape(B, 1, 1, 1)
    y_noisy = jnp.sqrt(g4) * y_0 + jnp.sqrt(1.0 - g4) * noise
    m = jnp.clip(mask, 0.0, 1.0)
    x_img = (y_noisy * m + (1.0 - m) * y_0).reshape(B, C, S)
    ycf = y_cond.reshape(B, C, S)
    emb = wemb * sample_gammas.reshape(B, 1, 1) + b1            # (B, H, 1)
    h = (jnp.einsum('hc,bcs->bhs', w1c, ycf, preferred_element_type=jnp.float32)
         + jnp.einsum('hc,bcs->bhs', w1x, x_img, preferred_element_type=jnp.float32)
         + emb)
    if use_bf16_act:
        hb = h.astype(jnp.bfloat16)
        act = hb * jax.nn.sigmoid(hb)
        out = jnp.einsum('ch,bhs->bcs', w2.astype(jnp.bfloat16), act,
                         preferred_element_type=jnp.float32) + b2
    else:
        act = h * jax.nn.sigmoid(h)
        out = jnp.einsum('ch,bhs->bcs', w2, act,
                         preferred_element_type=jnp.float32) + b2
    return out.reshape(B, C, Hi, Wi)


if __name__ == "__main__":
    key = jax.random.PRNGKey(0)
    B, C, Hi, Wi = 2, 4, 16, 16
    T_train = 100

    k_y0, k_yc, k_mask, k_noise, k_t, k_u, k_params = jax.random.split(key, 7)

    y_0 = jax.random.normal(k_y0, (B, C, Hi, Wi), jnp.float32)
    y_cond = jax.random.normal(k_yc, (B, C, Hi, Wi), jnp.float32)
    mask = (jax.random.uniform(k_mask, (B, 1, Hi, Wi)) > 0.5).astype(jnp.float32)
    noise = jax.random.normal(k_noise, (B, C, Hi, Wi), jnp.float32)

    # noise schedule + per-batch sample_gammas (glue, matches forward())
    gammas_train = make_gammas(T_train)
    t = jax.random.randint(k_t, (B,), 1, T_train)
    gamma_t1 = gammas_train[t - 1]
    gamma_t = gammas_train[t]
    u = jax.random.uniform(k_u, (B,), jnp.float32)
    sample_gammas = (gamma_t - gamma_t1) * u + gamma_t1     # (B,)

    params = init_denoise_params(k_params, C)

    use_bf16_act = _device_tuning()[0]   # same flag for kernel and reference

    out_noise, noise_hat = diffusion_forward(
        y_0, y_cond, mask, noise, sample_gammas, params,
        use_bf16_act=use_bf16_act)
    jax.block_until_ready((out_noise, noise_hat))

    assert out_noise.shape == (B, C, Hi, Wi)
    assert noise_hat.shape == (B, C, Hi, Wi)
    assert bool(jnp.all(jnp.isfinite(noise_hat)))

    ref = _reference_forward(y_0, y_cond, mask, noise, sample_gammas, params,
                             use_bf16_act=use_bf16_act)
    # tolerance absorbs MXU reduced-precision f32 passes and optional bf16
    # activations; algebra/masking bugs would be orders of magnitude larger.
    assert bool(jnp.allclose(noise_hat, ref, rtol=2e-2, atol=2e-2)), \
        "Pallas kernel diverges from pure-JAX reference"

    # TODO(synk): denoise_fn is an externally supplied UNet in the original code;
    # here it is a synthetic pointwise conv net with gamma conditioning.
    print("KERNEL_OK")
</pallas_src>

<mosaic_0001>
module attributes {stable_mosaic.version = 11 : i64} {
  func.func @_diffusion_kernel(%arg0: i32, %arg1: i32, %arg2: memref<6xf32, #tpu.memory_space<smem>>, %arg3: memref<1x4x256xf32, #tpu.memory_space<vmem>>, %arg4: memref<1x4x256xf32, #tpu.memory_space<vmem>>, %arg5: memref<1x1x256xbf16, #tpu.memory_space<vmem>>, %arg6: memref<1x4x256xf32, #tpu.memory_space<vmem>>, %arg7: memref<32x4xf32, #tpu.memory_space<vmem>>, %arg8: memref<32x4xf32, #tpu.memory_space<vmem>>, %arg9: memref<32x1xf32, #tpu.memory_space<vmem>>, %arg10: memref<32x1xf32, #tpu.memory_space<vmem>>, %arg11: memref<4x32xf32, #tpu.memory_space<vmem>>, %arg12: memref<4x1xf32, #tpu.memory_space<vmem>>, %arg13: memref<1x4x256xf32, #tpu.memory_space<vmem>>) attributes {dimension_semantics = [#tpu.dimension_semantics<parallel>, #tpu.dimension_semantics<parallel>], iteration_bounds = array<i64: 2, 1>, scalar_prefetch = 1 : i64, scratch_operands = 0 : i64, tpu.core_type = #tpu.core_type<tc>, window_params = [{transform_indices = @transform_0, window_bounds = array<i64: 1, 4, 256>}, {transform_indices = @transform_1, window_bounds = array<i64: 1, 4, 256>}, {transform_indices = @transform_2, window_bounds = array<i64: 1, 1, 256>}, {transform_indices = @transform_3, window_bounds = array<i64: 1, 4, 256>}, {pipeline_mode = #tpu.pipeline_mode<synchronous>, transform_indices = @transform_4, window_bounds = array<i64: 32, 4>}, {pipeline_mode = #tpu.pipeline_mode<synchronous>, transform_indices = @transform_5, window_bounds = array<i64: 32, 4>}, {pipeline_mode = #tpu.pipeline_mode<synchronous>, transform_indices = @transform_6, window_bounds = array<i64: 32, 1>}, {pipeline_mode = #tpu.pipeline_mode<synchronous>, transform_indices = @transform_7, window_bounds = array<i64: 32, 1>}, {pipeline_mode = #tpu.pipeline_mode<synchronous>, transform_indices = @transform_8, window_bounds = array<i64: 4, 32>}, {pipeline_mode = #tpu.pipeline_mode<synchronous>, transform_indices = @transform_9, window_bounds = array<i64: 4, 1>}, {transform_indices = @transform_10, window_bounds = array<i64: 1, 4, 256>}]} {
    %c3_i32 = arith.constant 3 : i32
    %0 = arith.muli %c3_i32, %arg0 : i32
    %1 = arith.index_cast %0 : i32 to index
    %2 = memref.load %arg2[%1] : memref<6xf32, #tpu.memory_space<smem>>
    %c3_i32_0 = arith.constant 3 : i32
    %3 = arith.muli %c3_i32_0, %arg0 : i32
    %c1_i32 = arith.constant 1 : i32
    %4 = arith.addi %3, %c1_i32 : i32
    %5 = arith.index_cast %4 : i32 to index
    %6 = memref.load %arg2[%5] : memref<6xf32, #tpu.memory_space<smem>>
    %c3_i32_1 = arith.constant 3 : i32
    %7 = arith.muli %c3_i32_1, %arg0 : i32
    %c2_i32 = arith.constant 2 : i32
    %8 = arith.addi %7, %c2_i32 : i32
    %9 = arith.index_cast %8 : i32 to index
    %10 = memref.load %arg2[%9] : memref<6xf32, #tpu.memory_space<smem>>
    %c0 = arith.constant 0 : index
    %c0_2 = arith.constant 0 : index
    %c0_3 = arith.constant 0 : index
    %11 = vector.load %arg3[%c0, %c0_2, %c0_3] : memref<1x4x256xf32, #tpu.memory_space<vmem>>, vector<1x4x256xf32>
    %12 = vector.shape_cast %11 : vector<1x4x256xf32> to vector<4x256xf32>
    %c0_4 = arith.constant 0 : index
    %c0_5 = arith.constant 0 : index
    %c0_6 = arith.constant 0 : index
    %13 = vector.load %arg6[%c0_4, %c0_5, %c0_6] : memref<1x4x256xf32, #tpu.memory_space<vmem>>, vector<1x4x256xf32>
    %14 = vector.shape_cast %13 : vector<1x4x256xf32> to vector<4x256xf32>
    %c0_7 = arith.constant 0 : index
    %c0_8 = arith.constant 0 : index
    %c0_9 = arith.constant 0 : index
    %15 = vector.load %arg4[%c0_7, %c0_8, %c0_9] : memref<1x4x256xf32, #tpu.memory_space<vmem>>, vector<1x4x256xf32>
    %16 = vector.shape_cast %15 : vector<1x4x256xf32> to vector<4x256xf32>
    %c0_10 = arith.constant 0 : index
    %c0_11 = arith.constant 0 : index
    %c0_12 = arith.constant 0 : index
    %17 = vector.load %arg5[%c0_10, %c0_11, %c0_12] : memref<1x1x256xbf16, #tpu.memory_space<vmem>>, vector<1x1x256xbf16>
    %18 = vector.shape_cast %17 : vector<1x1x256xbf16> to vector<1x256xbf16>
    %19 = arith.extf %18 : vector<1x256xbf16> to vector<1x256xf32>
    %cst = arith.constant 0.000000e+00 : f32
    %cst_13 = arith.constant 1.000000e+00 : f32
    %20 = vector.broadcast %cst : f32 to vector<1x256xf32>
    %21 = arith.maximumf %20, %19 : vector<1x256xf32>
    %22 = vector.broadcast %cst_13 : f32 to vector<1x256xf32>
    %23 = arith.minimumf %22, %21 : vector<1x256xf32>
    %24 = vector.broadcast %2 : f32 to vector<1x256xf32>
    %25 = arith.mulf %24, %23 : vector<1x256xf32>
    %cst_14 = arith.constant 1.000000e+00 : f32
    %26 = vector.broadcast %cst_14 : f32 to vector<1x256xf32>
    %27 = arith.subf %26, %23 : vector<1x256xf32>
    %28 = arith.addf %25, %27 : vector<1x256xf32>
    %29 = vector.broadcast %6 : f32 to vector<1x256xf32>
    %30 = arith.mulf %29, %23 : vector<1x256xf32>
    %31 = vector.broadcast %28 : vector<1x256xf32> to vector<4x256xf32>
    %32 = arith.mulf %31, %12 : vector<4x256xf32>
    %33 = vector.broadcast %30 : vector<1x256xf32> to vector<4x256xf32>
    %34 = arith.mulf %33, %14 : vector<4x256xf32>
    %35 = arith.addf %32, %34 : vector<4x256xf32>
    %c0_15 = arith.constant 0 : index
    %c0_16 = arith.constant 0 : index
    %36 = vector.load %arg10[%c0_15, %c0_16] : memref<32x1xf32, #tpu.memory_space<vmem>>, vector<32x1xf32>
    %37 = vector.broadcast %10 : f32 to vector<32x1xf32>
    %38 = arith.mulf %36, %37 : vector<32x1xf32>
    %c0_17 = arith.constant 0 : index
    %c0_18 = arith.constant 0 : index
    %39 = vector.load %arg9[%c0_17, %c0_18] : memref<32x1xf32, #tpu.memory_space<vmem>>, vector<32x1xf32>
    %40 = arith.addf %38, %39 : vector<32x1xf32>
    %c0_19 = arith.constant 0 : index
    %c0_20 = arith.constant 0 : index
    %41 = vector.load %arg7[%c0_19, %c0_20] : memref<32x4xf32, #tpu.memory_space<vmem>>, vector<32x4xf32>
    %cst_21 = arith.constant dense<0.000000e+00> : vector<32x256xf32>
    %42 = tpu.matmul %41, %16, %cst_21 {dimension_numbers = #tpu.dot_dimension_numbers<[1], [0], [0], [1], [0, 0, 1, 1], [], []>} : vector<32x4xf32>, vector<4x256xf32>, vector<32x256xf32> -> vector<32x256xf32>
    %c0_22 = arith.constant 0 : index
    %c0_23 = arith.constant 0 : index
    %43 = vector.load %arg8[%c0_22, %c0_23] : memref<32x4xf32, #tpu.memory_space<vmem>>, vector<32x4xf32>
    %cst_24 = arith.constant dense<0.000000e+00> : vector<32x256xf32>
    %44 = tpu.matmul %43, %35, %cst_24 {dimension_numbers = #tpu.dot_dimension_numbers<[1], [0], [0], [1], [0, 0, 1, 1], [], []>} : vector<32x4xf32>, vector<4x256xf32>, vector<32x256xf32> -> vector<32x256xf32>
    %45 = arith.addf %42, %44 : vector<32x256xf32>
    %46 = vector.broadcast %40 : vector<32x1xf32> to vector<32x256xf32>
    %47 = arith.addf %45, %46 : vector<32x256xf32>
    %48 = arith.negf %47 : vector<32x256xf32>
    %49 = math.exp %48 : vector<32x256xf32>
    %cst_25 = arith.constant 1.000000e+00 : f32
    %50 = vector.broadcast %cst_25 : f32 to vector<32x256xf32>
    %51 = arith.addf %50, %49 : vector<32x256xf32>
    %52 = arith.divf %50, %51 : vector<32x256xf32>
    %53 = arith.mulf %47, %52 : vector<32x256xf32>
    %c0_26 = arith.constant 0 : index
    %c0_27 = arith.constant 0 : index
    %54 = vector.load %arg11[%c0_26, %c0_27] : memref<4x32xf32, #tpu.memory_space<vmem>>, vector<4x32xf32>
    %cst_28 = arith.constant dense<0.000000e+00> : vector<4x256xf32>
    %55 = tpu.matmul %54, %53, %cst_28 {dimension_numbers = #tpu.dot_dimension_numbers<[1], [0], [0], [1], [0, 0, 1, 1], [], []>} : vector<4x32xf32>, vector<32x256xf32>, vector<4x256xf32> -> vector<4x256xf32>
    %c0_29 = arith.constant 0 : index
    %c0_30 = arith.constant 0 : index
    %56 = vector.load %arg12[%c0_29, %c0_30] : memref<4x1xf32, #tpu.memory_space<vmem>>, vector<4x1xf32>
    %57 = vector.broadcast %56 : vector<4x1xf32> to vector<4x256xf32>
    %58 = arith.addf %55, %57 : vector<4x256xf32>
    %c0_31 = arith.constant 0 : index
    %c0_32 = arith.constant 0 : index
    %c0_33 = arith.constant 0 : index
    %59 = vector.load %arg13[%c0_31, %c0_32, %c0_33] : memref<1x4x256xf32, #tpu.memory_space<vmem>>, vector<1x4x256xf32>
    %60 = vector.shape_cast %59 : vector<1x4x256xf32> to vector<4x256xf32>
    %61 = vector.shape_cast %58 : vector<4x256xf32> to vector<1x4x256xf32>
    tpu.vector_store %arg13[%c0_31, %c0_32, %c0_33], %61 {strides = array<i32>} : memref<1x4x256xf32, #tpu.memory_space<vmem>>, vector<1x4x256xf32>,
    return
  }
  func.func @transform_0(%arg0: i32, %arg1: i32, %arg2: memref<6xf32, #tpu.memory_space<smem>>) -> (i32, i32, i32) {
    %c0_i32 = arith.constant 0 : i32
    %c0_i32_0 = arith.constant 0 : i32
    return %arg0, %c0_i32, %arg1 : i32, i32, i32
  }
  func.func @transform_1(%arg0: i32, %arg1: i32, %arg2: memref<6xf32, #tpu.memory_space<smem>>) -> (i32, i32, i32) {
    %c0_i32 = arith.constant 0 : i32
    %c0_i32_0 = arith.constant 0 : i32
    return %arg0, %c0_i32, %arg1 : i32, i32, i32
  }
  func.func @transform_2(%arg0: i32, %arg1: i32, %arg2: memref<6xf32, #tpu.memory_space<smem>>) -> (i32, i32, i32) {
    %c0_i32 = arith.constant 0 : i32
    %c0_i32_0 = arith.constant 0 : i32
    return %arg0, %c0_i32, %arg1 : i32, i32, i32
  }
  func.func @transform_3(%arg0: i32, %arg1: i32, %arg2: memref<6xf32, #tpu.memory_space<smem>>) -> (i32, i32, i32) {
    %c0_i32 = arith.constant 0 : i32
    %c0_i32_0 = arith.constant 0 : i32
    return %arg0, %c0_i32, %arg1 : i32, i32, i32
  }
  func.func @transform_4(%arg0: i32, %arg1: i32, %arg2: memref<6xf32, #tpu.memory_space<smem>>) -> (i32, i32) {
    %c0_i32 = arith.constant 0 : i32
    %c0_i32_0 = arith.constant 0 : i32
    %c0_i32_1 = arith.constant 0 : i32
    return %c0_i32, %c0_i32_0 : i32, i32
  }
  func.func @transform_5(%arg0: i32, %arg1: i32, %arg2: memref<6xf32, #tpu.memory_space<smem>>) -> (i32, i32) {
    %c0_i32 = arith.constant 0 : i32
    %c0_i32_0 = arith.constant 0 : i32
    %c0_i32_1 = arith.constant 0 : i32
    return %c0_i32, %c0_i32_0 : i32, i32
  }
  func.func @transform_6(%arg0: i32, %arg1: i32, %arg2: memref<6xf32, #tpu.memory_space<smem>>) -> (i32, i32) {
    %c0_i32 = arith.constant 0 : i32
    %c0_i32_0 = arith.constant 0 : i32
    %c0_i32_1 = arith.constant 0 : i32
    return %c0_i32, %c0_i32_0 : i32, i32
  }
  func.func @transform_7(%arg0: i32, %arg1: i32, %arg2: memref<6xf32, #tpu.memory_space<smem>>) -> (i32, i32) {
    %c0_i32 = arith.constant 0 : i32
    %c0_i32_0 = arith.constant 0 : i32
    %c0_i32_1 = arith.constant 0 : i32
    return %c0_i32, %c0_i32_0 : i32, i32
  }
  func.func @transform_8(%arg0: i32, %arg1: i32, %arg2: memref<6xf32, #tpu.memory_space<smem>>) -> (i32, i32) {
    %c0_i32 = arith.constant 0 : i32
    %c0_i32_0 = arith.constant 0 : i32
    %c0_i32_1 = arith.constant 0 : i32
    return %c0_i32, %c0_i32_0 : i32, i32
  }
  func.func @transform_9(%arg0: i32, %arg1: i32, %arg2: memref<6xf32, #tpu.memory_space<smem>>) -> (i32, i32) {
    %c0_i32 = arith.constant 0 : i32
    %c0_i32_0 = arith.constant 0 : i32
    %c0_i32_1 = arith.constant 0 : i32
    return %c0_i32, %c0_i32_0 : i32, i32
  }
  func.func @transform_10(%arg0: i32, %arg1: i32, %arg2: memref<6xf32, #tpu.memory_space<smem>>) -> (i32, i32, i32) {
    %c0_i32 = arith.constant 0 : i32
    %c0_i32_0 = arith.constant 0 : i32
    return %arg0, %c0_i32, %arg1 : i32, i32, i32
  }
}

</mosaic_0001>

<llo_original>
// kernel: tpu_custom_call.1
$region0: #{tpu_custom_call.1}
  #allocation0 [shape = 'u32[]', space=smem, size = 0x4, offset = 0x4, fixed_abs, tag = 'smem constant byte address 0x4 - core index']
  #allocation1 [shape = 'u32[144,128]{1,0:T(1,128)}', space=vmem, size = 0x12000, scoped, tag = 'internal scratch']
  #allocation2 [shape = 's32[1]{0}', space=sflag, size = 0x4, scoped, tag = 'scoped memory for tpu_custom_call.1']
  #allocation3 [shape = 'u8[512]{0}', space=smem, size = 0x200, scoped, tag = 'prefetched SMEM operand 0']
  %s0 = inlined_call_operand.vmem [shape: f32[6], index: 0, kind: input, shape index: {}]
  %s1 = inlined_call_operand.vmem [shape: f32[2,4,256], index: 1, kind: input, shape index: {}]
  %s2 = inlined_call_operand.vmem [shape: f32[2,4,256], index: 2, kind: input, shape index: {}]
  %s3 = inlined_call_operand.vmem [shape: bf16[2,1,256], index: 3, kind: input, shape index: {}]
  %s4 = inlined_call_operand.vmem [shape: f32[2,4,256], index: 4, kind: input, shape index: {}]
  %s5 = inlined_call_operand.vmem [shape: f32[32,4], index: 5, kind: input, shape index: {}]
  %s6 = inlined_call_operand.vmem [shape: f32[32,4], index: 6, kind: input, shape index: {}]
  %s7 = inlined_call_operand.vmem [shape: f32[32,1], index: 7, kind: input, shape index: {}]
  %s8 = inlined_call_operand.vmem [shape: f32[32,1], index: 8, kind: input, shape index: {}]
  %s9 = inlined_call_operand.vmem [shape: f32[4,32], index: 9, kind: input, shape index: {}]
  %s10 = inlined_call_operand.vmem [shape: f32[4,1], index: 10, kind: input, shape index: {}]
  %s11 = inlined_call_operand.hbm [shape: f32[2,4,256], index: 11, kind: output, shape index: {}]
  %s12 = sld [smem:[#allocation0]]
  $region73: #{tpu_custom_call.1} parent=0
    _
  %s14 = ssub.s32 1, %s12
  %s15 = scalar_select 0, %s14, %s12
  %s16 = sshll.u32 %s0, 4
  %s17 = int_to_ptr.vmem [resolvable:$true] %s16
  %19 = dma.vmem_to_smem %s17, 16, [#allocation3], [#allocation2]
  %20 = dma.done [#allocation2], 16
  %21 = sfence
  $region1: #{tpu_custom_call.1} parent=0
    #allocation4 [shape = 'u8[8192]{0}', space=vmem, size = 0x2000, scoped, tag = 'output window, operand 0']
    #allocation5 [shape = 's32[2]{0}', space=sflag, size = 0x8, scoped, tag = 'scoped memory for tpu_custom_call.1']
    %22 = vsyncpa [#allocation5], 0
    %s23 = scalar_lea.sflag [#allocation5], 1
    %24 = vsyncpa %s23, 0
    loop: start=0, step=1, limit=4
    $region2: #{tpu_custom_call.1} parent=1 // loop_pre_header
      _
    $region3: #{tpu_custom_call.1} parent=1 // loop_header
      %s26 = sphi 0, %s30
      %p27 = scmp.ge.s32.totalorder %s26, 4
      %s33 = sphi 0, %s45
      %s34 = sphi 0, %s41
      %s35 = sphi 0, %s33
      %s36 = sphi 0, %s34
      %s37 = sphi 0, %s35
      %s38 = sphi 0, %s36
      %s50 = sphi 0, %s52
      %s53 = sphi 0, %s50
      %s54 = sphi 0, %s53
      %s70 = sphi 0, %s54
      %s78 = sphi 0, %s80
      %s81 = sphi 0, %s78
      %s82 = sphi 0, %s81
      %s98 = sphi 0, %s82
      %s106 = sphi 0, %s108
      %s109 = sphi 0, %s106
      %s110 = sphi 0, %s109
      %s126 = sphi 0, %s110
      %s134 = sphi 0, %s136
      %s137 = sphi 0, %s134
      %s138 = sphi 0, %s137
      %s154 = sphi 0, %s138
      %s158 = sphi 0, %s158
      %s160 = sphi 0, %s158
      %s161 = sphi 0, %s160
      %s175 = sphi 0, %s161
      %s179 = sphi 0, %s179
      %s181 = sphi 0, %s179
      %s182 = sphi 0, %s181
      %s196 = sphi 0, %s182
      %s200 = sphi 0, %s200
      %s202 = sphi 0, %s200
      %s203 = sphi 0, %s202
      %s217 = sphi 0, %s203
      %s221 = sphi 0, %s221
      %s223 = sphi 0, %s221
      %s224 = sphi 0, %s223
      %s238 = sphi 0, %s224
      %s242 = sphi 0, %s242
      %s244 = sphi 0, %s242
      %s245 = sphi 0, %s244
      %s259 = sphi 0, %s245
      %s263 = sphi 0, %s263
      %s265 = sphi 0, %s263
      %s266 = sphi 0, %s265
      %s280 = sphi 0, %s266
      %s288 = sphi 0, %s290
      %s291 = sphi 0, %s288
      %s292 = sphi 0, %s291
      %s308 = sphi 0, %s292
    $region4: #{tpu_custom_call.1} parent=1 // loop_header_branch
      %29 = sbr.rel (%p27) target = $region8
    $region5: #{tpu_custom_call.1} parent=1 // loop_body
      %s31 = ssub.s32 %s26, 1
      %s32 = ssub.s32 %s26, 2
      %s39 = sadd.s32 1, %s34
      %p40 = scmp.ge.s32.totalorder %s39, 1
      %s41 = scalar_select %p40, 0, %s39
      %s42 = sadd.s32 1, %s33
      %s43 = scalar_select %p40, %s42, %s33
      %p44 = scmp.ge.s32.totalorder %s43, 2
      %s45 = scalar_select %p44, 0, %s43
      %s46 = ssub.s32 %s33, %s45
      %s47 = ssub.s32 %s34, %s41
      %s48 = sor.u32 %s46, %s47
      %p49 = scmp.eq.s32.totalorder %s48, 0
      %s51 = sadd.s32 %s50, 1
      %s52 = scalar_select %p49, %s50, %s51
      %p55 = pneg %p49
      %p56 = scmp.eq.s32.totalorder %s26, 1
      %p57 = por %p55, %p56
      %p58 = scmp.ne.s32.totalorder %s50, %s53
      %p59 = scmp.eq.s32.totalorder %s26, 0
      %p60 = por %p58, %p59
      %p61 = scmp.ne.s32.totalorder %s50, %s53
      %p62 = scmp.eq.s32.totalorder %s31, 1
      %p63 = por %p61, %p62
      %p64 = scmp.ne.s32.totalorder %s53, %s54
      %p65 = scmp.eq.s32.totalorder %s31, 0
      %p66 = por %p64, %p65
      %p67 = scmp.ne.s32.totalorder %s53, %s54
      %p68 = scmp.eq.s32.totalorder %s32, 1
      %p69 = por %p67, %p68
      %p71 = scmp.ne.s32.totalorder %s54, %s70
      %p72 = scmp.eq.s32.totalorder %s32, 0
      %p73 = por %p71, %p72
      %s74 = ssub.s32 %s33, %s45
      %s75 = ssub.s32 %s34, %s41
      %s76 = sor.u32 %s74, %s75
      %p77 = scmp.eq.s32.totalorder %s76, 0
      %s79 = sadd.s32 %s78, 1
      %s80 = scalar_select %p77, %s78, %s79
      %p83 = pneg %p77
      %p84 = scmp.eq.s32.totalorder %s26, 1
      %p85 = por %p83, %p84
      %p86 = scmp.ne.s32.totalorder %s78, %s81
      %p87 = scmp.eq.s32.totalorder %s26, 0
      %p88 = por %p86, %p87
      %p89 = scmp.ne.s32.totalorder %s78, %s81
      %p90 = scmp.eq.s32.totalorder %s31, 1
      %p91 = por %p89, %p90
      %p92 = scmp.ne.s32.totalorder %s81, %s82
      %p93 = scmp.eq.s32.totalorder %s31, 0
      %p94 = por %p92, %p93
      %p95 = scmp.ne.s32.totalorder %s81, %s82
      %p96 = scmp.eq.s32.totalorder %s32, 1
      %p97 = por %p95, %p96
      %p99 = scmp.ne.s32.totalorder %s82, %s98
      %p100 = scmp.eq.s32.totalorder %s32, 0
      %p101 = por %p99, %p100
      %s102 = ssub.s32 %s33, %s45
      %s103 = ssub.s32 %s34, %s41
      %s104 = sor.u32 %s102, %s103
      %p105 = scmp.eq.s32.totalorder %s104, 0
      %s107 = sadd.s32 %s106, 1
      %s108 = scalar_select %p105, %s106, %s107
      %p111 = pneg %p105
      %p112 = scmp.eq.s32.totalorder %s26, 1
      %p113 = por %p111, %p112
      %p114 = scmp.ne.s32.totalorder %s106, %s109
      %p115 = scmp.eq.s32.totalorder %s26, 0
      %p116 = por %p114, %p115
      %p117 = scmp.ne.s32.totalorder %s106, %s109
      %p118 = scmp.eq.s32.totalorder %s31, 1
      %p119 = por %p117, %p118
      %p120 = scmp.ne.s32.totalorder %s109, %s110
      %p121 = scmp.eq.s32.totalorder %s31, 0
      %p122 = por %p120, %p121
      %p123 = scmp.ne.s32.totalorder %s109, %s110
      %p124 = scmp.eq.s32.totalorder %s32, 1
      %p125 = por %p123, %p124
      %p127 = scmp.ne.s32.totalorder %s110, %s126
      %p128 = scmp.eq.s32.totalorder %s32, 0
      %p129 = por %p127, %p128
      %s130 = ssub.s32 %s33, %s45
      %s131 = ssub.s32 %s34, %s41
      %s132 = sor.u32 %s130, %s131
      %p133 = scmp.eq.s32.totalorder %s132, 0
      %s135 = sadd.s32 %s134, 1
      %s136 = scalar_select %p133, %s134, %s135
      %p139 = pneg %p133
      %p140 = scmp.eq.s32.totalorder %s26, 1
      %p141 = por %p139, %p140
      %p142 = scmp.ne.s32.totalorder %s134, %s137
      %p143 = scmp.eq.s32.totalorder %s26, 0
      %p144 = por %p142, %p143
      %p145 = scmp.ne.s32.totalorder %s134, %s137
      %p146 = scmp.eq.s32.totalorder %s31, 1
      %p147 = por %p145, %p146
      %p148 = scmp.ne.s32.totalorder %s137, %s138
      %p149 = scmp.eq.s32.totalorder %s31, 0
      %p150 = por %p148, %p149
      %p151 = scmp.ne.s32.totalorder %s137, %s138
      %p152 = scmp.eq.s32.totalorder %s32, 1
      %p153 = por %p151, %p152
      %p155 = scmp.ne.s32.totalorder %s138, %s154
      %p156 = scmp.eq.s32.totalorder %s32, 0
      %p157 = por %p155, %p156
      %s159 = sadd.s32 %s158, 1
      %p162 = scmp.eq.s32.totalorder %s26, 1
      %p163 = scmp.ne.s32.totalorder %s158, %s160
      %p164 = scmp.eq.s32.totalorder %s26, 0
      %p165 = por %p163, %p164
      %p166 = scmp.ne.s32.totalorder %s158, %s160
      %p167 = scmp.eq.s32.totalorder %s31, 1
      %p168 = por %p166, %p167
      %p169 = scmp.ne.s32.totalorder %s160, %s161
      %p170 = scmp.eq.s32.totalorder %s31, 0
      %p171 = por %p169, %p170
      %p172 = scmp.ne.s32.totalorder %s160, %s161
      %p173 = scmp.eq.s32.totalorder %s32, 1
      %p174 = por %p172, %p173
      %p176 = scmp.ne.s32.totalorder %s161, %s175
      %p177 = scmp.eq.s32.totalorder %s32, 0
      %p178 = por %p176, %p177
      %s180 = sadd.s32 %s179, 1
      %p183 = scmp.eq.s32.totalorder %s26, 1
      %p184 = scmp.ne.s32.totalorder %s179, %s181
      %p185 = scmp.eq.s32.totalorder %s26, 0
      %p186 = por %p184, %p185
      %p187 = scmp.ne.s32.totalorder %s179, %s181
      %p188 = scmp.eq.s32.totalorder %s31, 1
      %p189 = por %p187, %p188
      %p190 = scmp.ne.s32.totalorder %s181, %s182
      %p191 = scmp.eq.s32.totalorder %s31, 0
      %p192 = por %p190, %p191
      %p193 = scmp.ne.s32.totalorder %s181, %s182
      %p194 = scmp.eq.s32.totalorder %s32, 1
      %p195 = por %p193, %p194
      %p197 = scmp.ne.s32.totalorder %s182, %s196
      %p198 = scmp.eq.s32.totalorder %s32, 0
      %p199 = por %p197, %p198
      %s201 = sadd.s32 %s200, 1
      %p204 = scmp.eq.s32.totalorder %s26, 1
      %p205 = scmp.ne.s32.totalorder %s200, %s202
      %p206 = scmp.eq.s32.totalorder %s26, 0
      %p207 = por %p205, %p206
      %p208 = scmp.ne.s32.totalorder %s200, %s202
      %p209 = scmp.eq.s32.totalorder %s31, 1
      %p210 = por %p208, %p209
      %p211 = scmp.ne.s32.totalorder %s202, %s203
      %p212 = scmp.eq.s32.totalorder %s31, 0
      %p213 = por %p211, %p212
      %p214 = scmp.ne.s32.totalorder %s202, %s203
      %p215 = scmp.eq.s32.totalorder %s32, 1
      %p216 = por %p214, %p215
      %p218 = scmp.ne.s32.totalorder %s203, %s217
      %p219 = scmp.eq.s32.totalorder %s32, 0
      %p220 = por %p218, %p219
      %s222 = sadd.s32 %s221, 1
      %p225 = scmp.eq.s32.totalorder %s26, 1
      %p226 = scmp.ne.s32.totalorder %s221, %s223
      %p227 = scmp.eq.s32.totalorder %s26, 0
      %p228 = por %p226, %p227
      %p229 = scmp.ne.s32.totalorder %s221, %s223
      %p230 = scmp.eq.s32.totalorder %s31, 1
      %p231 = por %p229, %p230
      %p232 = scmp.ne.s32.totalorder %s223, %s224
      %p233 = scmp.eq.s32.totalorder %s31, 0
      %p234 = por %p232, %p233
      %p235 = scmp.ne.s32.totalorder %s223, %s224
      %p236 = scmp.eq.s32.totalorder %s32, 1
      %p237 = por %p235, %p236
      %p239 = scmp.ne.s32.totalorder %s224, %s238
      %p240 = scmp.eq.s32.totalorder %s32, 0
      %p241 = por %p239, %p240
      %s243 = sadd.s32 %s242, 1
      %p246 = scmp.eq.s32.totalorder %s26, 1
      %p247 = scmp.ne.s32.totalorder %s242, %s244
      %p248 = scmp.eq.s32.totalorder %s26, 0
      %p249 = por %p247, %p248
      %p250 = scmp.ne.s32.totalorder %s242, %s244
      %p251 = scmp.eq.s32.totalorder %s31, 1
      %p252 = por %p250, %p251
      %p253 = scmp.ne.s32.totalorder %s244, %s245
      %p254 = scmp.eq.s32.totalorder %s31, 0
      %p255 = por %p253, %p254
      %p256 = scmp.ne.s32.totalorder %s244, %s245
      %p257 = scmp.eq.s32.totalorder %s32, 1
      %p258 = por %p256, %p257
      %p260 = scmp.ne.s32.totalorder %s245, %s259
      %p261 = scmp.eq.s32.totalorder %s32, 0
      %p262 = por %p260, %p261
      %s264 = sadd.s32 %s263, 1
      %p267 = scmp.eq.s32.totalorder %s26, 1
      %p268 = scmp.ne.s32.totalorder %s263, %s265
      %p269 = scmp.eq.s32.totalorder %s26, 0
      %p270 = por %p268, %p269
      %p271 = scmp.ne.s32.totalorder %s263, %s265
      %p272 = scmp.eq.s32.totalorder %s31, 1
      %p273 = por %p271, %p272
      %p274 = scmp.ne.s32.totalorder %s265, %s266
      %p275 = scmp.eq.s32.totalorder %s31, 0
      %p276 = por %p274, %p275
      %p277 = scmp.ne.s32.totalorder %s265, %s266
      %p278 = scmp.eq.s32.totalorder %s32, 1
      %p279 = por %p277, %p278
      %p281 = scmp.ne.s32.totalorder %s266, %s280
      %p282 = scmp.eq.s32.totalorder %s32, 0
      %p283 = por %p281, %p282
      %s284 = ssub.s32 %s33, %s45
      %s285 = ssub.s32 %s34, %s41
      %s286 = sor.u32 %s284, %s285
      %p287 = scmp.eq.s32.totalorder %s286, 0
      %s289 = sadd.s32 %s288, 1
      %s290 = scalar_select %p287, %s288, %s289
      %p293 = pneg %p287
      %p294 = scmp.eq.s32.totalorder %s26, 1
      %p295 = por %p293, %p294
      %p296 = scmp.ne.s32.totalorder %s288, %s291
      %p297 = scmp.eq.s32.totalorder %s26, 0
      %p298 = por %p296, %p297
      %p299 = scmp.ne.s32.totalorder %s288, %s291
      %p300 = scmp.eq.s32.totalorder %s31, 1
      %p301 = por %p299, %p300
      %p302 = scmp.ne.s32.totalorder %s291, %s292
      %p303 = scmp.eq.s32.totalorder %s31, 0
      %p304 = por %p302, %p303
      %p305 = scmp.ne.s32.totalorder %s291, %s292
      %p306 = scmp.eq.s32.totalorder %s32, 1
      %p307 = por %p305, %p306
      %p309 = scmp.ne.s32.totalorder %s292, %s308
      %p310 = scmp.eq.s32.totalorder %s32, 0
      %p311 = por %p309, %p310
      %p312 = scmp.le.s32.totalorder 1, %s26
      %p313 = scmp.lt.s32.totalorder %s26, 3
      %p314 = pnand %p312, %p313
      %p315 = pneg %p314
      // Predicated region
      $region9: #{tpu_custom_call.1} parent=5 // pred_check
        _
      $region10: #{tpu_custom_call.1} parent=5 // pred_check_branch
        %317 = sbr.rel (%p314) target = $region12
      $region11: #{tpu_custom_call.1} parent=5 // pred_region
        %s318 = ssub.s32 %s26, 1
        // Predicated region
        $region13: #{tpu_custom_call.1} parent=11 // pred_check
          %p319 = pneg %p171
        $region14: #{tpu_custom_call.1} parent=11 // pred_check_branch
          %321 = sbr.rel (%p319) target = $region16
        $region15: #{tpu_custom_call.1} parent=11 // pred_region
          _
        $region16: #{tpu_custom_call.1} parent=11 // pred_fallthru
          _
        // Predicated region
        $region17: #{tpu_custom_call.1} parent=11 // pred_check
          %p322 = pneg %p192
        $region18: #{tpu_custom_call.1} parent=11 // pred_check_branch
          %324 = sbr.rel (%p322) target = $region20
        $region19: #{tpu_custom_call.1} parent=11 // pred_region
          _
        $region20: #{tpu_custom_call.1} parent=11 // pred_fallthru
          _
        // Predicated region
        $region21: #{tpu_custom_call.1} parent=11 // pred_check
          %p325 = pneg %p213
        $region22: #{tpu_custom_call.1} parent=11 // pred_check_branch
          %327 = sbr.rel (%p325) target = $region24
        $region23: #{tpu_custom_call.1} parent=11 // pred_region
          _
        $region24: #{tpu_custom_call.1} parent=11 // pred_fallthru
          _
        // Predicated region
        $region25: #{tpu_custom_call.1} parent=11 // pred_check
          %p328 = pneg %p234
        $region26: #{tpu_custom_call.1} parent=11 // pred_check_branch
          %330 = sbr.rel (%p328) target = $region28
        $region27: #{tpu_custom_call.1} parent=11 // pred_region
          _
        $region28: #{tpu_custom_call.1} parent=11 // pred_fallthru
          _
        // Predicated region
        $region29: #{tpu_custom_call.1} parent=11 // pred_check
          %p331 = pneg %p255
        $region30: #{tpu_custom_call.1} parent=11 // pred_check_branch
          %333 = sbr.rel (%p331) target = $region32
        $region31: #{tpu_custom_call.1} parent=11 // pred_region
          _
        $region32: #{tpu_custom_call.1} parent=11 // pred_fallthru
          _
        // Predicated region
        $region33: #{tpu_custom_call.1} parent=11 // pred_check
          %p334 = pneg %p276
        $region34: #{tpu_custom_call.1} parent=11 // pred_check_branch
          %336 = sbr.rel (%p334) target = $region36
        $region35: #{tpu_custom_call.1} parent=11 // pred_region
          _
        $region36: #{tpu_custom_call.1} parent=11 // pred_fallthru
          _
      $region12: #{tpu_custom_call.1} parent=5 // pred_fallthru
        _
      %p337 = scmp.lt.s32.totalorder %s26, 2
      // Predicated region
      $region37: #{tpu_custom_call.1} parent=5 // pred_check
        %p338 = pneg %p337
      $region38: #{tpu_custom_call.1} parent=5 // pred_check_branch
        %340 = sbr.rel (%p338) target = $region40
      $region39: #{tpu_custom_call.1} parent=5 // pred_region
        // Predicated region
        $region41: #{tpu_custom_call.1} parent=39 // pred_check
          %p341 = pneg %p60
        $region42: #{tpu_custom_call.1} parent=39 // pred_check_branch
          %343 = sbr.rel (%p341) target = $region44
        $region43: #{tpu_custom_call.1} parent=39 // pred_region
          %s344 = smul.u32 2, %s34
          %p345 = scmp.lt.s32.totalorder %s33, 1
          %s346 = scalar_select %p345, %s33, 1
          %p347 = scmp.lt.s32.totalorder %s344, 1
          %s348 = scalar_select %p347, %s344, 1
          %s349 = smul.addr %s346, 2
          %s350 = sadd.s32 %s348, %s349
          %s351 = smul.addr %s350, 4
          %s352 = scalar_lea.vmem %s1, %s351
          %s353 = smul.u32 2, %s34
        $region44: #{tpu_custom_call.1} parent=39 // pred_fallthru
          _
        // Predicated region
        $region45: #{tpu_custom_call.1} parent=39 // pred_check
          %p354 = pneg %p88
        $region46: #{tpu_custom_call.1} parent=39 // pred_check_branch
          %356 = sbr.rel (%p354) target = $region48
        $region47: #{tpu_custom_call.1} parent=39 // pred_region
          %s357 = smul.u32 2, %s34
          %p358 = scmp.lt.s32.totalorder %s33, 1
          %s359 = scalar_select %p358, %s33, 1
          %p360 = scmp.lt.s32.totalorder %s357, 1
          %s361 = scalar_select %p360, %s357, 1
          %s362 = smul.addr %s359, 2
          %s363 = sadd.s32 %s361, %s362
          %s364 = smul.addr %s363, 4
          %s365 = scalar_lea.vmem %s2, %s364
          %s366 = smul.u32 2, %s34
        $region48: #{tpu_custom_call.1} parent=39 // pred_fallthru
          _
        // Predicated region
        $region49: #{tpu_custom_call.1} parent=39 // pred_check
          %p367 = pneg %p116
        $region50: #{tpu_custom_call.1} parent=39 // pred_check_branch
          %369 = sbr.rel (%p367) target = $region52
        $region51: #{tpu_custom_call.1} parent=39 // pred_region
          %s370 = smul.u32 2, %s34
          %p371 = scmp.lt.s32.totalorder %s33, 1
          %s372 = scalar_select %p371, %s33, 1
          %p373 = scmp.lt.s32.totalorder %s370, 1
          %s374 = scalar_select %p373, %s370, 1
          %s375 = smul.addr %s372, 2
          %s376 = sadd.s32 %s374, %s375
          %s377 = scalar_lea.vmem %s3, %s376
          %s378 = smul.u32 2, %s34
        $region52: #{tpu_custom_call.1} parent=39 // pred_fallthru
          _
        // Predicated region
        $region53: #{tpu_custom_call.1} parent=39 // pred_check
          %p379 = pneg %p144
        $region54: #{tpu_custom_call.1} parent=39 // pred_check_branch
          %381 = sbr.rel (%p379) target = $region56
        $region55: #{tpu_custom_call.1} parent=39 // pred_region
          %s382 = smul.u32 2, %s34
          %p383 = scmp.lt.s32.totalorder %s33, 1
          %s384 = scalar_select %p383, %s33, 1
          %p385 = scmp.lt.s32.totalorder %s382, 1
          %s386 = scalar_select %p385, %s382, 1
          %s387 = smul.addr %s384, 2
          %s388 = sadd.s32 %s386, %s387
          %s389 = smul.addr %s388, 4
          %s390 = scalar_lea.vmem %s4, %s389
          %s391 = smul.u32 2, %s34
        $region56: #{tpu_custom_call.1} parent=39 // pred_fallthru
          _
      $region40: #{tpu_custom_call.1} parent=5 // pred_fallthru
        _
      %p392 = scmp.le.s32.totalorder 1, %s26
      %p393 = scmp.lt.s32.totalorder %s26, 3
      %p394 = pnand %p392, %p393
      %p395 = pneg %p394
      // Predicated region
      $region57: #{tpu_custom_call.1} parent=5 // pred_check
        _
      $region58: #{tpu_custom_call.1} parent=5 // pred_check_branch
        %397 = sbr.rel (%p394) target = $region60
      $region59: #{tpu_custom_call.1} parent=5 // pred_region
        %s398 = ssub.s32 %s26, 1
        %s399 = smul.u32 2, %s36
        %p400 = scmp.lt.s32.totalorder %s35, 1
        %s401 = scalar_select %p400, %s35, 1
        %p402 = scmp.lt.s32.totalorder %s399, 1
        %s403 = scalar_select %p402, %s399, 1
        %s404 = smul.addr %s401, 2
        %s405 = sadd.s32 %s403, %s404
        %s406 = smul.addr %s405, 4
        %s407 = scalar_lea.vmem %s1, %s406
        %p408 = pneg %p66
        %p409 = pneg %p63
        %s410 = smul.u32 2, %s36
        %p411 = scmp.lt.s32.totalorder %s35, 1
        %s412 = scalar_select %p411, %s35, 1
        %p413 = scmp.lt.s32.totalorder %s410, 1
        %s414 = scalar_select %p413, %s410, 1
        %s415 = smul.addr %s412, 2
        %s416 = sadd.s32 %s414, %s415
        %s417 = smul.addr %s416, 4
        %s418 = scalar_lea.vmem %s2, %s417
        %p419 = pneg %p94
        %p420 = pneg %p91
        %s421 = smul.u32 2, %s36
        %p422 = scmp.lt.s32.totalorder %s35, 1
        %s423 = scalar_select %p422, %s35, 1
        %p424 = scmp.lt.s32.totalorder %s421, 1
        %s425 = scalar_select %p424, %s421, 1
        %s426 = smul.addr %s423, 2
        %s427 = sadd.s32 %s425, %s426
        %s428 = scalar_lea.vmem %s3, %s427
        %p429 = pneg %p122
        %p430 = pneg %p119
        %s431 = smul.u32 2, %s36
        %p432 = scmp.lt.s32.totalorder %s35, 1
        %s433 = scalar_select %p432, %s35, 1
        %p434 = scmp.lt.s32.totalorder %s431, 1
        %s435 = scalar_select %p434, %s431, 1
        %s436 = smul.addr %s433, 2
        %s437 = sadd.s32 %s435, %s436
        %s438 = smul.addr %s437, 4
        %s439 = scalar_lea.vmem %s4, %s438
        %p440 = pneg %p150
        %p441 = pneg %p147
        %p442 = pneg %p171
        %p443 = pneg %p168
        %p444 = pneg %p192
        %p445 = pneg %p189
        %p446 = pneg %p213
        %p447 = pneg %p210
        %p448 = pneg %p234
        %p449 = pneg %p231
        %p450 = pneg %p255
        %p451 = pneg %p252
        %p452 = pneg %p276
        %p453 = pneg %p273
        %p454 = pneg %p304
        %p455 = pneg %p301
        %s456 = sand.u32 %s291, 1
        %s457 = scalar_lea.sflag [#allocation5], %s456
        %s458 = sand.u32 %s291, 1
        %s459 = smul.addr %s458, 8
        %s460 = scalar_lea.vmem [#allocation4], %s459
        %s461 = smul.u32 2, %s36
        %p462 = scmp.lt.s32.totalorder %s35, 1
        %s463 = scalar_select %p462, %s35, 1
        %p464 = scmp.lt.s32.totalorder %s461, 1
        %s465 = scalar_select %p464, %s461, 1
        %s466 = smul.addr %s463, 2
        %s467 = sadd.s32 %s465, %s466
        %s468 = smul.addr %s467, 4
        %s469 = scalar_lea.vmem %s1, %s468
        %s470 = smul.u32 2, %s36
        %s471 = smul.u32 2, %s36
        %p472 = scmp.lt.s32.totalorder %s35, 1
        %s473 = scalar_select %p472, %s35, 1
        %p474 = scmp.lt.s32.totalorder %s471, 1
        %s475 = scalar_select %p474, %s471, 1
        %s476 = smul.addr %s473, 2
        %s477 = sadd.s32 %s475, %s476
        %s478 = smul.addr %s477, 4
        %s479 = scalar_lea.vmem %s2, %s478
        %s480 = smul.u32 2, %s36
        %s481 = smul.u32 2, %s36
        %p482 = scmp.lt.s32.totalorder %s35, 1
        %s483 = scalar_select %p482, %s35, 1
        %p484 = scmp.lt.s32.totalorder %s481, 1
        %s485 = scalar_select %p484, %s481, 1
        %s486 = smul.addr %s483, 2
        %s487 = sadd.s32 %s485, %s486
        %s488 = scalar_lea.vmem %s3, %s487
        %s489 = smul.u32 2, %s36
        %s490 = smul.u32 2, %s36
        %p491 = scmp.lt.s32.totalorder %s35, 1
        %s492 = scalar_select %p491, %s35, 1
        %p493 = scmp.lt.s32.totalorder %s490, 1
        %s494 = scalar_select %p493, %s490, 1
        %s495 = smul.addr %s492, 2
        %s496 = sadd.s32 %s494, %s495
        %s497 = smul.addr %s496, 4
        %s498 = scalar_lea.vmem %s4, %s497
        %s499 = smul.u32 2, %s36
        %s500 = smul.u32 2, %s36
        %s501 = smul.u32 %s35, 3
        %s502 = sld [smem:[#allocation3 + %s501]]
        %s503 = sadd.s32 %s501, 1
        %s504 = sld [smem:[#allocation3 + %s503]]
        %s505 = sadd.s32 %s501, 2
        %s506 = sld [smem:[#allocation3 + %s505]]
        %v507 = vld [vmem:[%s469] sm:$0xff]
        %v508 = vld [vmem:[%s498] sm:$0xff]
        %v509 = vld [vmem:[%s479] sm:$0xff]
        %v510 = vld [vmem:[%s488] sm:$0x3]
        %v511 = vunpack.c.l.bf16 %v510
        %v512 = vmax.f32 %v511, 0.0
        %v513 = vmin.f32 %v512, 1.0
        %v514 = vstv %s502
        %v515 = vmul.f32 %v514, %v513
        %v516 = vsub.f32 1.0, %v513
        %v517 = vadd.f32 %v515, %v516
        %v518 = vstv %s504
        %v519 = vmul.f32 %v518, %v513
        %v521 = vlaneseq
        %v522 = vshrl.u32 %v521, 7
        %v523 = vsub.s32 0, %v522
        %v524 = vrot.slane %v517, %v523
        %v525 = vlaneseq
        %v526 = vshrl.u32 %v525, 7
        %v527 = vsub.s32 2, %v526
        %v528 = vrot.slane %v517, %v527
        %v531 = vlaneseq
        %v532 = vshrl.u32 %v531, 7
        %v533 = vsub.s32 0, %v532
        %v534 = vrot.slane %v524, %v533
        %v535 = vlaneseq
        %v536 = vshrl.u32 %v535, 7
        %v537 = vsub.s32 0, %v536
        %v538 = vrot.slane %v528, %v537
        %v540 = vcombine.high %v507, %v507
        %v542 = vmul.f32 %v534, %v507
        %v543 = vmul.f32 %v538, %v540
        %v545 = vlaneseq
        %v546 = vshrl.u32 %v545, 7
        %v547 = vsub.s32 0, %v546
        %v548 = vrot.slane %v519, %v547
        %v549 = vlaneseq
        %v550 = vshrl.u32 %v549, 7
        %v551 = vsub.s32 2, %v550
        %v552 = vrot.slane %v519, %v551
        %v555 = vlaneseq
        %v556 = vshrl.u32 %v555, 7
        %v557 = vsub.s32 0, %v556
        %v558 = vrot.slane %v548, %v557
        %v559 = vlaneseq
        %v560 = vshrl.u32 %v559, 7
        %v561 = vsub.s32 0, %v560
        %v562 = vrot.slane %v552, %v561
        %v564 = vcombine.high %v508, %v508
        %v566 = vmul.f32 %v558, %v508
        %v567 = vmul.f32 %v562, %v564
        %v568 = vadd.f32 %v542, %v566
        %v569 = vadd.f32 %v543, %v567
        %v570 = vld [vmem:[%s8] sm:$0xff]
        %v571 = vld [vmem:[%s8 + $0x8] sm:$0xff]
        %v572 = vld [vmem:[%s8 + $0x10] sm:$0xff]
        %v573 = vld [vmem:[%s8 + $0x18] sm:$0xff]
        %v574 = vstv %s506
        %v575 = vmul.f32 %v570, %v574
        %v576 = vmul.f32 %v571, %v574
        %v577 = vmul.f32 %v572, %v574
        %v578 = vmul.f32 %v573, %v574
        %v579 = vld [vmem:[%s7] sm:$0xff]
        %v580 = vld [vmem:[%s7 + $0x8] sm:$0xff]
        %v581 = vld [vmem:[%s7 + $0x10] sm:$0xff]
        %v582 = vld [vmem:[%s7 + $0x18] sm:$0xff]
        %v583 = vadd.f32 %v575, %v579
        %v584 = vadd.f32 %v576, %v580
        %v585 = vadd.f32 %v577, %v581
        %v586 = vadd.f32 %v578, %v582
        %v587 = vld [vmem:[%s5] sm:$0xff]
        %v588 = vld [vmem:[%s5 + $0x8] sm:$0xff]
        %v589 = vld [vmem:[%s5 + $0x10] sm:$0xff]
        %v590 = vld [vmem:[%s5 + $0x18] sm:$0xff]
        %v591 = vld [vmem:[%s6] sm:$0xff]
        %v592 = vld [vmem:[%s6 + $0x8] sm:$0xff]
        %v593 = vld [vmem:[%s6 + $0x10] sm:$0xff]
        %v594 = vld [vmem:[%s6 + $0x18] sm:$0xff]
        %vm595 = vcmask 31744
        %v597 = vsel %vm595, %v591, 0
        %v600 = vsel %vm595, %v592, 0
        %v603 = vsel %vm595, %v593, 0
        %v606 = vsel %vm595, %v594, 0
        %vm608 = vcmask 1043456
        %v610 = vsel %vm608, %v568, 0
        %v613 = vsel %vm608, %v569, 0
        %615 = vmatprep.subr.mxu0 %v613
        %616 = vmatpush1.msra.mxu0 %v610
        %617 = vmatprep.subr.mxu0 0.0
        %618 = vmatpush1.msra.mxu0 0.0
        %619 = vmatprep.subr.mxu0 0.0
        %620 = vmatpush1.msra.mxu0 0.0
        %621 = vmatprep.subr.mxu0 0.0
        %622 = vmatpush1.msra.mxu0 0.0
        %623 = vmatprep.subr.mxu0 0.0
        %624 = vmatpush1.msra.mxu0 0.0
        %625 = vmatprep.subr.mxu0 0.0
        %626 = vmatpush1.msra.mxu0 0.0
        %627 = vmatprep.subr.mxu0 0.0
        %628 = vmatpush1.msra.mxu0 0.0
        %629 = vmatprep.subr.mxu0 0.0
        %630 = vmatpush1.msra.mxu0 0.0
        %631 = vmatprep.subr.mxu0 0.0
        %632 = vmatpush1.msra.mxu0 0.0
        %633 = vmatprep.subr.mxu0 0.0
        %634 = vmatpush1.msra.mxu0 0.0
        %635 = vmatprep.subr.mxu0 0.0
        %636 = vmatpush1.msra.mxu0 0.0
        %637 = vmatprep.subr.mxu0 0.0
        %638 = vmatpush1.msra.mxu0 0.0
        %639 = vmatprep.subr.mxu0 0.0
        %640 = vmatpush1.msra.mxu0 0.0
        %641 = vmatprep.subr.mxu0 0.0
        %642 = vmatpush1.msra.mxu0 0.0
        %643 = vmatprep.subr.mxu0 0.0
        %644 = vmatpush1.msra.mxu0 0.0
        %645 = vmatprep.subr.mxu0 0.0
        %646 = vmatpush1.msra.mxu0 0.0
        %647 = vmatprep.subr.mxu0 0.0
        %648 = vmatpush1.msra.mxu0 0.0
        %649 = vmatprep.subr.mxu0 0.0
        %650 = vmatpush1.msra.mxu0 0.0
        %651 = vmatprep.subr.mxu0 0.0
        %652 = vmatpush1.msra.mxu0 0.0
        %653 = vmatprep.subr.mxu0 0.0
        %654 = vmatpush1.msra.mxu0 0.0
        %655 = vmatprep.subr.mxu0 0.0
        %656 = vmatpush1.msra.mxu0 0.0
        %657 = vmatprep.subr.mxu0 0.0
        %658 = vmatpush1.msra.mxu0 0.0
        %659 = vmatprep.subr.mxu0 0.0
        %660 = vmatpush1.msra.mxu0 0.0
        %661 = vmatprep.subr.mxu0 0.0
        %662 = vmatpush1.msra.mxu0 0.0
        %663 = vmatprep.subr.mxu0 0.0
        %664 = vmatpush1.msra.mxu0 0.0
        %665 = vmatprep.subr.mxu0 0.0
        %666 = vmatpush1.msra.mxu0 0.0
        %667 = vmatprep.subr.mxu0 0.0
        %668 = vmatpush1.msra.mxu0 0.0
        %669 = vmatprep.subr.mxu0 0.0
        %670 = vmatpush1.msra.mxu0 0.0
        %671 = vmatprep.subr.mxu0 0.0
        %672 = vmatpush1.msra.mxu0 0.0
        %673 = vmatprep.subr.mxu0 0.0
        %674 = vmatpush1.msra.mxu0 0.0
        %675 = vmatprep.subr.mxu0 0.0
        %676 = vmatpush1.msra.mxu0 0.0
        %677 = vmatprep.subr.mxu0 0.0
        %678 = vmatpush1.msra.mxu0 0.0
        %679 = vmatprep.mubr.f32.mxu0 0.0
        %680 = vmatmul.mubr.f32.gmra.mrb[0].mxu0 %v597
        %v681 = vpop.f32.mrb[0].mxu0
        %v682 = vadd.f32 0.0, %v681
        %v683 = vpop.f32.mrb[0].mxu0
        %v684 = vadd.f32 0.0, %v683
        %685 = vmatprep.mubr.f32.mxu0 0.0
        %686 = vmatmul.mubr.f32.gmra.mrb[0].mxu0 %v600
        %v687 = vpop.f32.mrb[0].mxu0
        %v688 = vadd.f32 0.0, %v687
        %v689 = vpop.f32.mrb[0].mxu0
        %v690 = vadd.f32 0.0, %v689
        %691 = vmatprep.mubr.f32.mxu0 0.0
        %692 = vmatmul.mubr.f32.gmra.mrb[0].mxu0 %v603
        %v693 = vpop.f32.mrb[0].mxu0
        %v694 = vadd.f32 0.0, %v693
        %v695 = vpop.f32.mrb[0].mxu0
        %v696 = vadd.f32 0.0, %v695
        %697 = vmatprep.mubr.f32.mxu0 0.0
        %698 = vmatmul.mubr.f32.gmra.mrb[0].mxu0 %v606
        %v699 = vpop.f32.mrb[0].mxu0
        %v700 = vadd.f32 0.0, %v699
        %v701 = vpop.f32.mrb[0].mxu0
        %v702 = vadd.f32 0.0, %v701
        %703 = vdwg.mxu0
        %v705 = vcombine.high %v509, %v509
        %v707 = vsel %vm595, %v587, 0
        %v710 = vsel %vm595, %v588, 0
        %v713 = vsel %vm595, %v589, 0
        %v716 = vsel %vm595, %v590, 0
        %v718 = vsel %vm608, %v509, 0
        %v720 = vsel %vm608, %v705, 0
        %722 = vmatprep.subr.mxu0 %v720
        %723 = vmatpush1.msra.mxu0 %v718
        %724 = vmatprep.subr.mxu0 0.0
        %725 = vmatpush1.msra.mxu0 0.0
        %726 = vmatprep.subr.mxu0 0.0
        %727 = vmatpush1.msra.mxu0 0.0
        %728 = vmatprep.subr.mxu0 0.0
        %729 = vmatpush1.msra.mxu0 0.0
        %730 = vmatprep.subr.mxu0 0.0
        %731 = vmatpush1.msra.mxu0 0.0
        %732 = vmatprep.subr.mxu0 0.0
        %733 = vmatpush1.msra.mxu0 0.0
        %734 = vmatprep.subr.mxu0 0.0
        %735 = vmatpush1.msra.mxu0 0.0
        %736 = vmatprep.subr.mxu0 0.0
        %737 = vmatpush1.msra.mxu0 0.0
        %738 = vmatprep.subr.mxu0 0.0
        %739 = vmatpush1.msra.mxu0 0.0
        %740 = vmatprep.subr.mxu0 0.0
        %741 = vmatpush1.msra.mxu0 0.0
        %742 = vmatprep.subr.mxu0 0.0
        %743 = vmatpush1.msra.mxu0 0.0
        %744 = vmatprep.subr.mxu0 0.0
        %745 = vmatpush1.msra.mxu0 0.0
        %746 = vmatprep.subr.mxu0 0.0
        %747 = vmatpush1.msra.mxu0 0.0
        %748 = vmatprep.subr.mxu0 0.0
        %749 = vmatpush1.msra.mxu0 0.0
        %750 = vmatprep.subr.mxu0 0.0
        %751 = vmatpush1.msra.mxu0 0.0
        %752 = vmatprep.subr.mxu0 0.0
        %753 = vmatpush1.msra.mxu0 0.0
        %754 = vmatprep.subr.mxu0 0.0
        %755 = vmatpush1.msra.mxu0 0.0
        %756 = vmatprep.subr.mxu0 0.0
        %757 = vmatpush1.msra.mxu0 0.0
        %758 = vmatprep.subr.mxu0 0.0
        %759 = vmatpush1.msra.mxu0 0.0
        %760 = vmatprep.subr.mxu0 0.0
        %761 = vmatpush1.msra.mxu0 0.0
        %762 = vmatprep.subr.mxu0 0.0
        %763 = vmatpush1.msra.mxu0 0.0
        %764 = vmatprep.subr.mxu0 0.0
        %765 = vmatpush1.msra.mxu0 0.0
        %766 = vmatprep.subr.mxu0 0.0
        %767 = vmatpush1.msra.mxu0 0.0
        %768 = vmatprep.subr.mxu0 0.0
        %769 = vmatpush1.msra.mxu0 0.0
        %770 = vmatprep.subr.mxu0 0.0
        %771 = vmatpush1.msra.mxu0 0.0
        %772 = vmatprep.subr.mxu0 0.0
        %773 = vmatpush1.msra.mxu0 0.0
        %774 = vmatprep.subr.mxu0 0.0
        %775 = vmatpush1.msra.mxu0 0.0
        %776 = vmatprep.subr.mxu0 0.0
        %777 = vmatpush1.msra.mxu0 0.0
        %778 = vmatprep.subr.mxu0 0.0
        %779 = vmatpush1.msra.mxu0 0.0
        %780 = vmatprep.subr.mxu0 0.0
        %781 = vmatpush1.msra.mxu0 0.0
        %782 = vmatprep.subr.mxu0 0.0
        %783 = vmatpush1.msra.mxu0 0.0
        %784 = vmatprep.subr.mxu0 0.0
        %785 = vmatpush1.msra.mxu0 0.0
        %786 = vmatprep.mubr.f32.mxu0 0.0
        %787 = vmatmul.mubr.f32.gmra.mrb[0].mxu0 %v707
        %v788 = vpop.f32.mrb[0].mxu0
        %v789 = vadd.f32 %v682, %v788
        %v790 = vpop.f32.mrb[0].mxu0
        %v791 = vadd.f32 %v684, %v790
        %792 = vmatprep.mubr.f32.mxu0 0.0
        %793 = vmatmul.mubr.f32.gmra.mrb[0].mxu0 %v710
        %v794 = vpop.f32.mrb[0].mxu0
        %v795 = vadd.f32 %v688, %v794
        %v796 = vpop.f32.mrb[0].mxu0
        %v797 = vadd.f32 %v690, %v796
        %798 = vmatprep.mubr.f32.mxu0 0.0
        %799 = vmatmul.mubr.f32.gmra.mrb[0].mxu0 %v713
        %v800 = vpop.f32.mrb[0].mxu0
        %v801 = vadd.f32 %v694, %v800
        %v802 = vpop.f32.mrb[0].mxu0
        %v803 = vadd.f32 %v696, %v802
        %804 = vmatprep.mubr.f32.mxu0 0.0
        %805 = vmatmul.mubr.f32.gmra.mrb[0].mxu0 %v716
        %v806 = vpop.f32.mrb[0].mxu0
        %v807 = vadd.f32 %v700, %v806
        %v808 = vpop.f32.mrb[0].mxu0
        %v809 = vadd.f32 %v702, %v808
        %810 = vdwg.mxu0
        %812 = vset.pattern.permute.xlu0 0
        %813 = vperm.xlu0 %812, %v583
        %v814 = vpop.permute.xlu0 %813
        %817 = vset.pattern.permute.xlu0 0
        %818 = vperm.xlu0 %817, %v584
        %v819 = vpop.permute.xlu0 %818
        %822 = vset.pattern.permute.xlu0 0
        %823 = vperm.xlu0 %822, %v585
        %v824 = vpop.permute.xlu0 %823
        %827 = vset.pattern.permute.xlu0 0
        %828 = vperm.xlu0 %827, %v586
        %v829 = vpop.permute.xlu0 %828
        %v831 = vadd.f32 %v789, %v814
        %v832 = vadd.f32 %v791, %v814
        %v833 = vadd.f32 %v795, %v819
        %v834 = vadd.f32 %v797, %v819
        %v835 = vadd.f32 %v801, %v824
        %v836 = vadd.f32 %v803, %v824
        %v837 = vadd.f32 %v807, %v829
        %v838 = vadd.f32 %v809, %v829
        %v839 = vxor.u32 %v831, 2147483648
        %v840 = vxor.u32 %v832, 2147483648
        %v841 = vxor.u32 %v833, 2147483648
        %v842 = vxor.u32 %v834, 2147483648
        %v843 = vxor.u32 %v835, 2147483648
        %v844 = vxor.u32 %v836, 2147483648
        %v845 = vxor.u32 %v837, 2147483648
        %v846 = vxor.u32 %v838, 2147483648
        %v847 = vmul.f32 %v839, 1.442695
        %v848 = vpow.pop %v847
        %v849 = vmul.f32 %v840, 1.442695
        %v850 = vpow.pop %v849
        %v851 = vmul.f32 %v841, 1.442695
        %v852 = vpow.pop %v851
        %v853 = vmul.f32 %v842, 1.442695
        %v854 = vpow.pop %v853
        %v855 = vmul.f32 %v843, 1.442695
        %v856 = vpow.pop %v855
        %v857 = vmul.f32 %v844, 1.442695
        %v858 = vpow.pop %v857
        %v859 = vmul.f32 %v845, 1.442695
        %v860 = vpow.pop %v859
        %v861 = vmul.f32 %v846, 1.442695
        %v862 = vpow.pop %v861
        %v863 = vadd.f32 %v848, 1.0
        %v864 = vadd.f32 %v850, 1.0
        %v865 = vadd.f32 %v852, 1.0
        %v866 = vadd.f32 %v854, 1.0
        %v867 = vadd.f32 %v856, 1.0
        %v868 = vadd.f32 %v858, 1.0
        %v869 = vadd.f32 %v860, 1.0
        %v870 = vadd.f32 %v862, 1.0
        %v871 = vrcp.pop %v863
        %v872 = vmul.f32 1.0, %v871
        %v873 = vrcp.pop %v864
        %v874 = vmul.f32 1.0, %v873
        %v875 = vrcp.pop %v865
        %v876 = vmul.f32 1.0, %v875
        %v877 = vrcp.pop %v866
        %v878 = vmul.f32 1.0, %v877
        %v879 = vrcp.pop %v867
        %v880 = vmul.f32 1.0, %v879
        %v881 = vrcp.pop %v868
        %v882 = vmul.f32 1.0, %v881
        %v883 = vrcp.pop %v869
        %v884 = vmul.f32 1.0, %v883
        %v885 = vrcp.pop %v870
        %v886 = vmul.f32 1.0, %v885
        %v887 = vmul.f32 %v831, %v872
        %v888 = vmul.f32 %v832, %v874
        %v889 = vmul.f32 %v833, %v876
        %v890 = vmul.f32 %v834, %v878
        %v891 = vmul.f32 %v835, %v880
        %v892 = vmul.f32 %v836, %v882
        %v893 = vmul.f32 %v837, %v884
        %v894 = vmul.f32 %v838, %v886
        %v895 = vld [vmem:[%s9] sm:$0xf]
        %v896 = vld [vmem:[%s10] sm:$0xf]
        %898 = vset.pattern.permute.xlu0 0
        %899 = vperm.xlu0 %898, %v896
        %v900 = vpop.permute.xlu0 %899
        %vm902 = vcmask 261120
        %v904 = vsel %vm902, %v895, 0
        %906 = vmatprep.subr.mxu0 %v888
        %907 = vmatpush1.msra.mxu0 %v887
        %908 = vmatprep.subr.mxu0 %v890
        %909 = vmatpush1.msra.mxu0 %v889
        %910 = vmatprep.subr.mxu0 %v892
        %911 = vmatpush1.msra.mxu0 %v891
        %912 = vmatprep.subr.mxu0 %v894
        %913 = vmatpush1.msra.mxu0 %v893
        %914 = vmatprep.subr.mxu0 0.0
        %915 = vmatpush1.msra.mxu0 0.0
        %916 = vmatprep.subr.mxu0 0.0
        %917 = vmatpush1.msra.mxu0 0.0
        %918 = vmatprep.subr.mxu0 0.0
        %919 = vmatpush1.msra.mxu0 0.0
        %920 = vmatprep.subr.mxu0 0.0
        %921 = vmatpush1.msra.mxu0 0.0
        %922 = vmatprep.subr.mxu0 0.0
        %923 = vmatpush1.msra.mxu0 0.0
        %924 = vmatprep.subr.mxu0 0.0
        %925 = vmatpush1.msra.mxu0 0.0
        %926 = vmatprep.subr.mxu0 0.0
        %927 = vmatpush1.msra.mxu0 0.0
        %928 = vmatprep.subr.mxu0 0.0
        %929 = vmatpush1.msra.mxu0 0.0
        %930 = vmatprep.subr.mxu0 0.0
        %931 = vmatpush1.msra.mxu0 0.0
        %932 = vmatprep.subr.mxu0 0.0
        %933 = vmatpush1.msra.mxu0 0.0
        %934 = vmatprep.subr.mxu0 0.0
        %935 = vmatpush1.msra.mxu0 0.0
        %936 = vmatprep.subr.mxu0 0.0
        %937 = vmatpush1.msra.mxu0 0.0
        %938 = vmatprep.subr.mxu0 0.0
        %939 = vmatpush1.msra.mxu0 0.0
        %940 = vmatprep.subr.mxu0 0.0
        %941 = vmatpush1.msra.mxu0 0.0
        %942 = vmatprep.subr.mxu0 0.0
        %943 = vmatpush1.msra.mxu0 0.0
        %944 = vmatprep.subr.mxu0 0.0
        %945 = vmatpush1.msra.mxu0 0.0
        %946 = vmatprep.subr.mxu0 0.0
        %947 = vmatpush1.msra.mxu0 0.0
        %948 = vmatprep.subr.mxu0 0.0
        %949 = vmatpush1.msra.mxu0 0.0
        %950 = vmatprep.subr.mxu0 0.0
        %951 = vmatpush1.msra.mxu0 0.0
        %952 = vmatprep.subr.mxu0 0.0
        %953 = vmatpush1.msra.mxu0 0.0
        %954 = vmatprep.subr.mxu0 0.0
        %955 = vmatpush1.msra.mxu0 0.0
        %956 = vmatprep.subr.mxu0 0.0
        %957 = vmatpush1.msra.mxu0 0.0
        %958 = vmatprep.subr.mxu0 0.0
        %959 = vmatpush1.msra.mxu0 0.0
        %960 = vmatprep.subr.mxu0 0.0
        %961 = vmatpush1.msra.mxu0 0.0
        %962 = vmatprep.subr.mxu0 0.0
        %963 = vmatpush1.msra.mxu0 0.0
        %964 = vmatprep.subr.mxu0 0.0
        %965 = vmatpush1.msra.mxu0 0.0
        %966 = vmatprep.subr.mxu0 0.0
        %967 = vmatpush1.msra.mxu0 0.0
        %968 = vmatprep.subr.mxu0 0.0
        %969 = vmatpush1.msra.mxu0 0.0
        %970 = vmatprep.mubr.f32.mxu0 0.0
        %971 = vmatmul.mubr.f32.gmra.mrb[0].mxu0 %v904
        %v972 = vpop.f32.mrb[0].mxu0
        %v973 = vadd.f32 %v900, %v972
        %v974 = vpop.f32.mrb[0].mxu0
        %v975 = vadd.f32 %v900, %v974
        %976 = vdwg.mxu0
        %v979 = vcombine.low %v973, %v975
        %981 = vst [vmem:[%s460] sm:$0xff] %v979
        %s982 = sand.u32 %s291, 1
        %s983 = scalar_lea.sflag [#allocation5], %s982
        %s984 = sand.u32 %s291, 1
        %s985 = smul.addr %s984, 8
        %s986 = scalar_lea.vmem [#allocation4], %s985
        // Predicated region
        $region61: #{tpu_custom_call.1} parent=59 // pred_check
          %p987 = pneg %p301
        $region62: #{tpu_custom_call.1} parent=59 // pred_check_branch
          %989 = sbr.rel (%p987) target = $region64
        $region63: #{tpu_custom_call.1} parent=59 // pred_region
          %s990 = smul.u32 2, %s36
          %s992 = ssub.s32 128, 128
          %993 = vsyncadd %s983, %s992
          %s994 = smul.addr %s35, 2
          %s995 = sadd.s32 %s990, %s994
          %s996 = smul.addr %s995, 64
          %s997 = scalar_lea.hbm %s11, %s996
          %s999 = sshll.u32 %s986, 4
          %s1000 = int_to_ptr.vmem [resolvable:$true] %s999
          %1002 = dma.vmem_to_hbm [thread:$0]  %s1000, 128, %s997, %s983
        $region64: #{tpu_custom_call.1} parent=59 // pred_fallthru
          _
      $region60: #{tpu_custom_call.1} parent=5 // pred_fallthru
        _
      %p1003 = scmp.le.s32.totalorder 2, %s26
      // Predicated region
      $region65: #{tpu_custom_call.1} parent=5 // pred_check
        %p1004 = pneg %p1003
      $region66: #{tpu_custom_call.1} parent=5 // pred_check_branch
        %1006 = sbr.rel (%p1004) target = $region68
      $region67: #{tpu_custom_call.1} parent=5 // pred_region
        %s1007 = ssub.s32 %s26, 2
        // Predicated region
        $region69: #{tpu_custom_call.1} parent=67 // pred_check
          %p1008 = pneg %p307
        $region70: #{tpu_custom_call.1} parent=67 // pred_check_branch
          %1010 = sbr.rel (%p1008) target = $region72
        $region71: #{tpu_custom_call.1} parent=67 // pred_region
          %s1011 = sand.u32 %s292, 1
          %s1012 = scalar_lea.sflag [#allocation5], %s1011
          %s1013 = sand.u32 %s292, 1
          %s1014 = smul.addr %s1013, 8
          %s1015 = scalar_lea.vmem [#allocation4], %s1014
          %1016 = dma.done %s1012, 128
        $region72: #{tpu_custom_call.1} parent=67 // pred_fallthru
          _
      $region68: #{tpu_custom_call.1} parent=5 // pred_fallthru
        _
    $region6: #{tpu_custom_call.1} parent=1 // loop_footer
      %s30 = sadd.s32 1, %s26
    $region7: #{tpu_custom_call.1} parent=1 // loop_footer_branch
      %25 = sbr.rel target = $region3
    $region8: #{tpu_custom_call.1} parent=1 // loop_exit
      _
    %1017 = vsyncpa [#allocation5], 1
    %s1018 = scalar_lea.sflag [#allocation5], 1
    %1019 = vsyncpa %s1018, 1

</llo_original>
